<compile_context>
chip_gen: v5e
topology: v5e:2x2
jax: 0.10.0
libtpu: 0.0.40
codegen_flags: <defaults>
</compile_context>

<pallas_src>
import jax
import jax.numpy as jnp
from jax.experimental import pallas as pl
from jax.experimental.pallas import tpu as pltpu

BOARD_SIZE = 9
IN_FEATURES = BOARD_SIZE
OUT_FEATURES = 16
PAD_IN = 16            # 9 -> 16 (sublane-aligned contraction dim)
DEFAULT_BATCH_TILE = 512   # lanes per grid step (multiple of 128)


def qnet_kernel(x_ref, w1_ref, b1_ref, w2_ref, b2_ref, w3_ref, b3_ref, o_ref):
    # x_ref: (PAD_IN, TB) feature-major — batch tile on lanes.
    xT = x_ref[...]

    # layer1: Linear + ReLU  (Dropout(0.2) is identity at inference)
    h1 = jnp.dot(w1_ref[...], xT, preferred_element_type=jnp.float32) + b1_ref[...]
    h1 = jnp.maximum(h1, 0.0)                                  # (16, TB)

    # layer2: Linear + ReLU  (Dropout(0.2) is identity at inference)
    h2 = jnp.dot(w2_ref[...], h1, preferred_element_type=jnp.float32) + b2_ref[...]
    h2 = jnp.maximum(h2, 0.0)                                  # (16, TB)

    # output_layer: Linear + Sigmoid
    logits = jnp.dot(w3_ref[...], h2, preferred_element_type=jnp.float32) + b3_ref[...]
    o_ref[...] = jax.nn.sigmoid(logits)                        # (9, TB)


def qnet_forward(x, params, *, batch_tile=DEFAULT_BATCH_TILE):
    """x: (B, IN_FEATURES) float32.  params: dict of PyTorch-convention weights."""
    B = x.shape[0]
    TB = batch_tile
    num_tiles = pl.cdiv(B, TB)
    B_pad = num_tiles * TB

    # --- wrapper-side layout plumbing (one-time, KB-scale) -----------------
    # Pad features 9 -> 16 and batch B -> B_pad, then flip to feature-major so
    # the kernel sees lane-dense (features, batch) slabs.
    x_pad = jnp.zeros((B_pad, PAD_IN), jnp.float32)
    x_pad = x_pad.at[:B, :IN_FEATURES].set(x.astype(jnp.float32))
    xT = x_pad.T                                               # (16, B_pad)

    # Weights stay in PyTorch (out, in) convention; pad w1's input dim 9 -> 16
    # with zero columns (zero-padded rows of xT * zero cols of w1 contribute 0).
    w1p = jnp.zeros((OUT_FEATURES, PAD_IN), jnp.float32)
    w1p = w1p.at[:, :IN_FEATURES].set(params["w1"].astype(jnp.float32))
    w2 = params["w2"].astype(jnp.float32)                      # (16, 16)
    w3 = params["w3"].astype(jnp.float32)                      # (9, 16)
    b1 = params["b1"].astype(jnp.float32).reshape(-1, 1)       # (16, 1)
    b2 = params["b2"].astype(jnp.float32).reshape(-1, 1)       # (16, 1)
    b3 = params["b3"].astype(jnp.float32).reshape(-1, 1)       # (9, 1)

    const = lambda shape: pl.BlockSpec(shape, lambda i: (0, 0))

    outT = pl.pallas_call(
        qnet_kernel,
        out_shape=jax.ShapeDtypeStruct((BOARD_SIZE, B_pad), jnp.float32),
        grid=(num_tiles,),
        in_specs=[
            pl.BlockSpec((PAD_IN, TB), lambda i: (0, i)),      # batch-tiled input
            const(w1p.shape), const(b1.shape),                 # weights resident
            const(w2.shape), const(b2.shape),
            const(w3.shape), const(b3.shape),
        ],
        out_specs=pl.BlockSpec((BOARD_SIZE, TB), lambda i: (0, i)),
        compiler_params=pltpu.CompilerParams(
            dimension_semantics=("parallel",)),                # megacore on v7x
    )(xT, w1p, b1, w2, b2, w3, b3)

    # Back to the caller's (B, 9) row-major convention; drop batch padding.
    return outT.T[:B]


def init_params(key):
    """Deterministic init mimicking nn.Linear's U(-1/sqrt(fan_in), 1/sqrt(fan_in))."""
    ks = jax.random.split(key, 6)

    def lin(kw, kb, fan_in, fan_out):
        bound = 1.0 / jnp.sqrt(fan_in)
        w = jax.random.uniform(kw, (fan_out, fan_in), jnp.float32, -bound, bound)
        b = jax.random.uniform(kb, (fan_out,), jnp.float32, -bound, bound)
        return w, b

    w1, b1 = lin(ks[0], ks[1], IN_FEATURES, OUT_FEATURES)
    w2, b2 = lin(ks[2], ks[3], OUT_FEATURES, OUT_FEATURES)
    w3, b3 = lin(ks[4], ks[5], OUT_FEATURES, BOARD_SIZE)
    return {"w1": w1, "b1": b1, "w2": w2, "b2": b2, "w3": w3, "b3": b3}


def qnet_reference(x, params):
    """Pure-JAX reference for a sanity check."""
    h1 = jnp.maximum(x @ params["w1"].T + params["b1"], 0.0)
    h2 = jnp.maximum(h1 @ params["w2"].T + params["b2"], 0.0)
    return jax.nn.sigmoid(h2 @ params["w3"].T + params["b3"])


if __name__ == "__main__":
    key = jax.random.PRNGKey(0)
    k_params, k_x = jax.random.split(key)

    params = init_params(k_params)

    batch = 8
    # Tic-tac-toe board encoded as 9 scalars in {-1, 0, 1}.
    x = jax.random.randint(k_x, (batch, IN_FEATURES), -1, 2).astype(jnp.float32)

    out = qnet_forward(x, params)
    out = jax.block_until_ready(out)

    ref = qnet_reference(x, params)
    assert out.shape == (batch, BOARD_SIZE)
    assert jnp.allclose(out, ref, atol=1e-5, rtol=1e-5)

    print("KERNEL_OK")
</pallas_src>

<mosaic_0001>
module attributes {stable_mosaic.version = 11 : i64} {
  func.func @qnet_kernel(%arg0: i32, %arg1: memref<16x512xf32, #tpu.memory_space<vmem>>, %arg2: memref<16x16xf32, #tpu.memory_space<vmem>>, %arg3: memref<16x1xf32, #tpu.memory_space<vmem>>, %arg4: memref<16x16xf32, #tpu.memory_space<vmem>>, %arg5: memref<16x1xf32, #tpu.memory_space<vmem>>, %arg6: memref<9x16xf32, #tpu.memory_space<vmem>>, %arg7: memref<9x1xf32, #tpu.memory_space<vmem>>, %arg8: memref<9x512xf32, #tpu.memory_space<vmem>>) attributes {dimension_semantics = [#tpu.dimension_semantics<parallel>], iteration_bounds = array<i64: 1>, scalar_prefetch = 0 : i64, scratch_operands = 0 : i64, tpu.core_type = #tpu.core_type<tc>, window_params = [{transform_indices = @transform_0, window_bounds = array<i64: 16, 512>}, {pipeline_mode = #tpu.pipeline_mode<synchronous>, transform_indices = @transform_1, window_bounds = array<i64: 16, 16>}, {pipeline_mode = #tpu.pipeline_mode<synchronous>, transform_indices = @transform_2, window_bounds = array<i64: 16, 1>}, {pipeline_mode = #tpu.pipeline_mode<synchronous>, transform_indices = @transform_3, window_bounds = array<i64: 16, 16>}, {pipeline_mode = #tpu.pipeline_mode<synchronous>, transform_indices = @transform_4, window_bounds = array<i64: 16, 1>}, {pipeline_mode = #tpu.pipeline_mode<synchronous>, transform_indices = @transform_5, window_bounds = array<i64: 9, 16>}, {pipeline_mode = #tpu.pipeline_mode<synchronous>, transform_indices = @transform_6, window_bounds = array<i64: 9, 1>}, {transform_indices = @transform_7, window_bounds = array<i64: 9, 512>}]} {
    %c0 = arith.constant 0 : index
    %c0_0 = arith.constant 0 : index
    %0 = vector.load %arg1[%c0, %c0_0] : memref<16x512xf32, #tpu.memory_space<vmem>>, vector<16x512xf32>
    %c0_1 = arith.constant 0 : index
    %c0_2 = arith.constant 0 : index
    %1 = vector.load %arg2[%c0_1, %c0_2] : memref<16x16xf32, #tpu.memory_space<vmem>>, vector<16x16xf32>
    %cst = arith.constant dense<0.000000e+00> : vector<16x512xf32>
    %2 = tpu.matmul %1, %0, %cst {dimension_numbers = #tpu.dot_dimension_numbers<[1], [0], [0], [1], [0, 0, 1, 1], [], []>} : vector<16x16xf32>, vector<16x512xf32>, vector<16x512xf32> -> vector<16x512xf32>
    %c0_3 = arith.constant 0 : index
    %c0_4 = arith.constant 0 : index
    %3 = vector.load %arg3[%c0_3, %c0_4] : memref<16x1xf32, #tpu.memory_space<vmem>>, vector<16x1xf32>
    %4 = vector.broadcast %3 : vector<16x1xf32> to vector<16x512xf32>
    %5 = arith.addf %2, %4 : vector<16x512xf32>
    %cst_5 = arith.constant 0.000000e+00 : f32
    %6 = vector.broadcast %cst_5 : f32 to vector<16x512xf32>
    %7 = arith.maximumf %5, %6 : vector<16x512xf32>
    %c0_6 = arith.constant 0 : index
    %c0_7 = arith.constant 0 : index
    %8 = vector.load %arg4[%c0_6, %c0_7] : memref<16x16xf32, #tpu.memory_space<vmem>>, vector<16x16xf32>
    %cst_8 = arith.constant dense<0.000000e+00> : vector<16x512xf32>
    %9 = tpu.matmul %8, %7, %cst_8 {dimension_numbers = #tpu.dot_dimension_numbers<[1], [0], [0], [1], [0, 0, 1, 1], [], []>} : vector<16x16xf32>, vector<16x512xf32>, vector<16x512xf32> -> vector<16x512xf32>
    %c0_9 = arith.constant 0 : index
    %c0_10 = arith.constant 0 : index
    %10 = vector.load %arg5[%c0_9, %c0_10] : memref<16x1xf32, #tpu.memory_space<vmem>>, vector<16x1xf32>
    %11 = vector.broadcast %10 : vector<16x1xf32> to vector<16x512xf32>
    %12 = arith.addf %9, %11 : vector<16x512xf32>
    %cst_11 = arith.constant 0.000000e+00 : f32
    %13 = vector.broadcast %cst_11 : f32 to vector<16x512xf32>
    %14 = arith.maximumf %12, %13 : vector<16x512xf32>
    %c0_12 = arith.constant 0 : index
    %c0_13 = arith.constant 0 : index
    %15 = vector.load %arg6[%c0_12, %c0_13] : memref<9x16xf32, #tpu.memory_space<vmem>>, vector<9x16xf32>
    %cst_14 = arith.constant dense<0.000000e+00> : vector<9x512xf32>
    %16 = tpu.matmul %15, %14, %cst_14 {dimension_numbers = #tpu.dot_dimension_numbers<[1], [0], [0], [1], [0, 0, 1, 1], [], []>} : vector<9x16xf32>, vector<16x512xf32>, vector<9x512xf32> -> vector<9x512xf32>
    %c0_15 = arith.constant 0 : index
    %c0_16 = arith.constant 0 : index
    %17 = vector.load %arg7[%c0_15, %c0_16] : memref<9x1xf32, #tpu.memory_space<vmem>>, vector<9x1xf32>
    %18 = vector.broadcast %17 : vector<9x1xf32> to vector<9x512xf32>
    %19 = arith.addf %16, %18 : vector<9x512xf32>
    %20 = arith.negf %19 : vector<9x512xf32>
    %21 = math.exp %20 : vector<9x512xf32>
    %cst_17 = arith.constant 1.000000e+00 : f32
    %22 = vector.broadcast %cst_17 : f32 to vector<9x512xf32>
    %23 = arith.addf %22, %21 : vector<9x512xf32>
    %24 = arith.divf %22, %23 : vector<9x512xf32>
    %c0_18 = arith.constant 0 : index
    %c0_19 = arith.constant 0 : index
    %25 = vector.load %arg8[%c0_18, %c0_19] : memref<9x512xf32, #tpu.memory_space<vmem>>, vector<9x512xf32>
    tpu.vector_store %arg8[%c0_18, %c0_19], %24 {strides = array<i32>} : memref<9x512xf32, #tpu.memory_space<vmem>>, vector<9x512xf32>,
    return
  }
  func.func @transform_0(%arg0: i32) -> (i32, i32) {
    %c0_i32 = arith.constant 0 : i32
    %c0_i32_0 = arith.constant 0 : i32
    return %c0_i32, %arg0 : i32, i32
  }
  func.func @transform_1(%arg0: i32) -> (i32, i32) {
    %c0_i32 = arith.constant 0 : i32
    %c0_i32_0 = arith.constant 0 : i32
    %c0_i32_1 = arith.constant 0 : i32
    return %c0_i32, %c0_i32_0 : i32, i32
  }
  func.func @transform_2(%arg0: i32) -> (i32, i32) {
    %c0_i32 = arith.constant 0 : i32
    %c0_i32_0 = arith.constant 0 : i32
    %c0_i32_1 = arith.constant 0 : i32
    return %c0_i32, %c0_i32_0 : i32, i32
  }
  func.func @transform_3(%arg0: i32) -> (i32, i32) {
    %c0_i32 = arith.constant 0 : i32
    %c0_i32_0 = arith.constant 0 : i32
    %c0_i32_1 = arith.constant 0 : i32
    return %c0_i32, %c0_i32_0 : i32, i32
  }
  func.func @transform_4(%arg0: i32) -> (i32, i32) {
    %c0_i32 = arith.constant 0 : i32
    %c0_i32_0 = arith.constant 0 : i32
    %c0_i32_1 = arith.constant 0 : i32
    return %c0_i32, %c0_i32_0 : i32, i32
  }
  func.func @transform_5(%arg0: i32) -> (i32, i32) {
    %c0_i32 = arith.constant 0 : i32
    %c0_i32_0 = arith.constant 0 : i32
    %c0_i32_1 = arith.constant 0 : i32
    return %c0_i32, %c0_i32_0 : i32, i32
  }
  func.func @transform_6(%arg0: i32) -> (i32, i32) {
    %c0_i32 = arith.constant 0 : i32
    %c0_i32_0 = arith.constant 0 : i32
    %c0_i32_1 = arith.constant 0 : i32
    return %c0_i32, %c0_i32_0 : i32, i32
  }
  func.func @transform_7(%arg0: i32) -> (i32, i32) {
    %c0_i32 = arith.constant 0 : i32
    %c0_i32_0 = arith.constant 0 : i32
    return %c0_i32, %arg0 : i32, i32
  }
}

</mosaic_0001>

<llo_original>
// kernel: tpu_custom_call.1
$region0: #{tpu_custom_call.1}
  #allocation0 [shape = 'u32[]', space=smem, size = 0x4, offset = 0x4, fixed_abs, tag = 'smem constant byte address 0x4 - core index']
  #allocation1 [shape = 'u32[72,128]{1,0:T(1,128)}', space=vmem, size = 0x9000, scoped, tag = 'internal scratch']
  %s0 = inlined_call_operand.hbm [shape: f32[16,512], index: 0, kind: input, shape index: {}]
  %s1 = inlined_call_operand.vmem [shape: f32[16,16], index: 1, kind: input, shape index: {}]
  %s2 = inlined_call_operand.vmem [shape: f32[16,1], index: 2, kind: input, shape index: {}]
  %s3 = inlined_call_operand.vmem [shape: f32[16,16], index: 3, kind: input, shape index: {}]
  %s4 = inlined_call_operand.vmem [shape: f32[16,1], index: 4, kind: input, shape index: {}]
  %s5 = inlined_call_operand.vmem [shape: f32[9,16], index: 5, kind: input, shape index: {}]
  %s6 = inlined_call_operand.vmem [shape: f32[9,1], index: 6, kind: input, shape index: {}]
  %s7 = inlined_call_operand.hbm [shape: f32[9,512], index: 7, kind: output, shape index: {}]
  %s8 = sld [smem:[#allocation0]]
  $region42: #{tpu_custom_call.1} parent=0
    _
  %s10 = ssub.s32 1, %s8
  %s11 = scalar_select 0, %s10, %s8
  $region1: #{tpu_custom_call.1} parent=0
    #allocation2 [shape = 'u8[32768]{0}', space=vmem, size = 0x8000, scoped, tag = 'input window, operand 0, single buffered']
    #allocation3 [shape = 's32[1]{0}', space=sflag, size = 0x4, scoped, tag = 'scoped memory for tpu_custom_call.1']
    #allocation4 [shape = 's32[1]{0}', space=sflag, size = 0x4, scoped, tag = 'scoped memory for tpu_custom_call.1']
    #allocation5 [shape = 'u8[32768]{0}', space=vmem, size = 0x8000, scoped, tag = 'output window, operand 0, single buffered']
    %12 = vsyncpa [#allocation3], 0
    %13 = vsyncpa [#allocation4], 0
    // Predicated region
    $region2: #{tpu_custom_call.1} parent=1 // pred_check
      _
    $region3: #{tpu_custom_call.1} parent=1 // pred_check_branch
      %15 = sbr.rel (0) target = $region5
    $region4: #{tpu_custom_call.1} parent=1 // pred_region
      %17 = vsyncadd [#allocation3], 0
      %s18 = sshll.u32 %s0, 4
      %s19 = int_to_ptr.hbm [resolvable:$true] %s18
      %s20 = sshll.u32 [#allocation2], 4
      %s21 = int_to_ptr.vmem [resolvable:$true] %s20
      %26 = dma.hbm_to_vmem [thread:$0]  %s19, 1024, %s21, [#allocation3], 512, 512, 32
    $region5: #{tpu_custom_call.1} parent=1 // pred_fallthru
      _
    // Predicated region
    $region6: #{tpu_custom_call.1} parent=1 // pred_check
      _
    $region7: #{tpu_custom_call.1} parent=1 // pred_check_branch
      %28 = sbr.rel (0) target = $region9
    $region8: #{tpu_custom_call.1} parent=1 // pred_region
      _
    $region9: #{tpu_custom_call.1} parent=1 // pred_fallthru
      _
    // Predicated region
    $region10: #{tpu_custom_call.1} parent=1 // pred_check
      _
    $region11: #{tpu_custom_call.1} parent=1 // pred_check_branch
      %30 = sbr.rel (0) target = $region13
    $region12: #{tpu_custom_call.1} parent=1 // pred_region
      _
    $region13: #{tpu_custom_call.1} parent=1 // pred_fallthru
      _
    // Predicated region
    $region14: #{tpu_custom_call.1} parent=1 // pred_check
      _
    $region15: #{tpu_custom_call.1} parent=1 // pred_check_branch
      %32 = sbr.rel (0) target = $region17
    $region16: #{tpu_custom_call.1} parent=1 // pred_region
      _
    $region17: #{tpu_custom_call.1} parent=1 // pred_fallthru
      _
    // Predicated region
    $region18: #{tpu_custom_call.1} parent=1 // pred_check
      _
    $region19: #{tpu_custom_call.1} parent=1 // pred_check_branch
      %34 = sbr.rel (0) target = $region21
    $region20: #{tpu_custom_call.1} parent=1 // pred_region
      _
    $region21: #{tpu_custom_call.1} parent=1 // pred_fallthru
      _
    // Predicated region
    $region22: #{tpu_custom_call.1} parent=1 // pred_check
      _
    $region23: #{tpu_custom_call.1} parent=1 // pred_check_branch
      %36 = sbr.rel (0) target = $region25
    $region24: #{tpu_custom_call.1} parent=1 // pred_region
      _
    $region25: #{tpu_custom_call.1} parent=1 // pred_fallthru
      _
    // Predicated region
    $region26: #{tpu_custom_call.1} parent=1 // pred_check
      _
    $region27: #{tpu_custom_call.1} parent=1 // pred_check_branch
      %38 = sbr.rel (0) target = $region29
    $region28: #{tpu_custom_call.1} parent=1 // pred_region
      _
    $region29: #{tpu_custom_call.1} parent=1 // pred_fallthru
      _
    // Predicated region
    $region30: #{tpu_custom_call.1} parent=1 // pred_check
      _
    $region31: #{tpu_custom_call.1} parent=1 // pred_check_branch
      %40 = sbr.rel (0) target = $region33
    $region32: #{tpu_custom_call.1} parent=1 // pred_region
      %42 = dma.done [#allocation3], 1024
    $region33: #{tpu_custom_call.1} parent=1 // pred_fallthru
      _
    %v43 = vld [vmem:[#allocation2] sm:$0xff]
    %v44 = vld [vmem:[#allocation2 + $0x8] sm:$0xff]
    %v45 = vld [vmem:[#allocation2 + $0x10] sm:$0xff]
    %v46 = vld [vmem:[#allocation2 + $0x18] sm:$0xff]
    %v47 = vld [vmem:[#allocation2 + $0x20] sm:$0xff]
    %v48 = vld [vmem:[#allocation2 + $0x28] sm:$0xff]
    %v49 = vld [vmem:[#allocation2 + $0x30] sm:$0xff]
    %v50 = vld [vmem:[#allocation2 + $0x38] sm:$0xff]
    %v51 = vld [vmem:[%s1] sm:$0xff]
    %v52 = vld [vmem:[%s1 + $0x8] sm:$0xff]
    %v53 = vld [vmem:[%s2] sm:$0xff]
    %v54 = vld [vmem:[%s2 + $0x8] sm:$0xff]
    %56 = vset.pattern.permute.xlu0 0
    %57 = vperm.xlu0 %56, %v53
    %v58 = vpop.permute.xlu0 %57
    %61 = vset.pattern.permute.xlu0 0
    %62 = vperm.xlu0 %61, %v54
    %v63 = vpop.permute.xlu0 %62
    %vm65 = vcmask 130048
    %v67 = vsel %vm65, %v51, 0
    %v70 = vsel %vm65, %v52, 0
    %72 = vmatpush.msra.mxu0 0.0
    %73 = vmatpush.msra.mxu0 0.0
    %74 = vmatpush.msra.mxu0 0.0
    %75 = vmatpush.msra.mxu0 0.0
    %76 = vmatpush.msra.mxu0 0.0
    %77 = vmatpush.msra.mxu0 0.0
    %78 = vmatpush.msra.mxu0 0.0
    %79 = vmatpush.msra.mxu0 0.0
    %80 = vmatpush.msra.mxu0 0.0
    %81 = vmatpush.msra.mxu0 0.0
    %82 = vmatpush.msra.mxu0 0.0
    %83 = vmatpush.msra.mxu0 0.0
    %84 = vmatpush.msra.mxu0 0.0
    %85 = vmatpush.msra.mxu0 0.0
    %86 = vmatpush.msra.mxu0 %v47
    %87 = vmatpush.msra.mxu0 %v43
    %88 = vmatmul.f32.gmra.mxu0 %v67
    %v89 = vpop.f32.mrf.mxu0
    %v90 = vadd.f32 %v58, %v89
    %91 = vmatmul.f32.gmra.mxu0 %v70
    %v92 = vpop.f32.mrf.mxu0
    %v93 = vadd.f32 %v63, %v92
    %94 = vdwg.mxu0
    %95 = vmatpush.msra.mxu0 0.0
    %96 = vmatpush.msra.mxu0 0.0
    %97 = vmatpush.msra.mxu0 0.0
    %98 = vmatpush.msra.mxu0 0.0
    %99 = vmatpush.msra.mxu0 0.0
    %100 = vmatpush.msra.mxu0 0.0
    %101 = vmatpush.msra.mxu0 0.0
    %102 = vmatpush.msra.mxu0 0.0
    %103 = vmatpush.msra.mxu0 0.0
    %104 = vmatpush.msra.mxu0 0.0
    %105 = vmatpush.msra.mxu0 0.0
    %106 = vmatpush.msra.mxu0 0.0
    %107 = vmatpush.msra.mxu0 0.0
    %108 = vmatpush.msra.mxu0 0.0
    %109 = vmatpush.msra.mxu0 %v48
    %110 = vmatpush.msra.mxu0 %v44
    %111 = vmatmul.f32.gmra.mxu0 %v67
    %v112 = vpop.f32.mrf.mxu0
    %v113 = vadd.f32 %v58, %v112
    %114 = vmatmul.f32.gmra.mxu0 %v70
    %v115 = vpop.f32.mrf.mxu0
    %v116 = vadd.f32 %v63, %v115
    %117 = vdwg.mxu0
    %118 = vmatpush.msra.mxu0 0.0
    %119 = vmatpush.msra.mxu0 0.0
    %120 = vmatpush.msra.mxu0 0.0
    %121 = vmatpush.msra.mxu0 0.0
    %122 = vmatpush.msra.mxu0 0.0
    %123 = vmatpush.msra.mxu0 0.0
    %124 = vmatpush.msra.mxu0 0.0
    %125 = vmatpush.msra.mxu0 0.0
    %126 = vmatpush.msra.mxu0 0.0
    %127 = vmatpush.msra.mxu0 0.0
    %128 = vmatpush.msra.mxu0 0.0
    %129 = vmatpush.msra.mxu0 0.0
    %130 = vmatpush.msra.mxu0 0.0
    %131 = vmatpush.msra.mxu0 0.0
    %132 = vmatpush.msra.mxu0 %v49
    %133 = vmatpush.msra.mxu0 %v45
    %134 = vmatmul.f32.gmra.mxu0 %v67
    %v135 = vpop.f32.mrf.mxu0
    %v136 = vadd.f32 %v58, %v135
    %137 = vmatmul.f32.gmra.mxu0 %v70
    %v138 = vpop.f32.mrf.mxu0
    %v139 = vadd.f32 %v63, %v138
    %140 = vdwg.mxu0
    %141 = vmatpush.msra.mxu0 0.0
    %142 = vmatpush.msra.mxu0 0.0
    %143 = vmatpush.msra.mxu0 0.0
    %144 = vmatpush.msra.mxu0 0.0
    %145 = vmatpush.msra.mxu0 0.0
    %146 = vmatpush.msra.mxu0 0.0
    %147 = vmatpush.msra.mxu0 0.0
    %148 = vmatpush.msra.mxu0 0.0
    %149 = vmatpush.msra.mxu0 0.0
    %150 = vmatpush.msra.mxu0 0.0
    %151 = vmatpush.msra.mxu0 0.0
    %152 = vmatpush.msra.mxu0 0.0
    %153 = vmatpush.msra.mxu0 0.0
    %154 = vmatpush.msra.mxu0 0.0
    %155 = vmatpush.msra.mxu0 %v50
    %156 = vmatpush.msra.mxu0 %v46
    %157 = vmatmul.f32.gmra.mxu0 %v67
    %v158 = vpop.f32.mrf.mxu0
    %v159 = vadd.f32 %v58, %v158
    %160 = vmatmul.f32.gmra.mxu0 %v70
    %v161 = vpop.f32.mrf.mxu0
    %v162 = vadd.f32 %v63, %v161
    %163 = vdwg.mxu0
    %v164 = vmax.f32 %v90, 0.0
    %v165 = vmax.f32 %v113, 0.0
    %v166 = vmax.f32 %v136, 0.0
    %v167 = vmax.f32 %v159, 0.0
    %v168 = vmax.f32 %v93, 0.0
    %v169 = vmax.f32 %v116, 0.0
    %v170 = vmax.f32 %v139, 0.0
    %v171 = vmax.f32 %v162, 0.0
    %v172 = vld [vmem:[%s3] sm:$0xff]
    %v173 = vld [vmem:[%s3 + $0x8] sm:$0xff]
    %v174 = vld [vmem:[%s4] sm:$0xff]
    %v175 = vld [vmem:[%s4 + $0x8] sm:$0xff]
    %177 = vset.pattern.permute.xlu0 0
    %178 = vperm.xlu0 %177, %v174
    %v179 = vpop.permute.xlu0 %178
    %182 = vset.pattern.permute.xlu0 0
    %183 = vperm.xlu0 %182, %v175
    %v184 = vpop.permute.xlu0 %183
    %v187 = vsel %vm65, %v172, 0
    %v190 = vsel %vm65, %v173, 0
    %192 = vmatpush.msra.mxu0 0.0
    %193 = vmatpush.msra.mxu0 0.0
    %194 = vmatpush.msra.mxu0 0.0
    %195 = vmatpush.msra.mxu0 0.0
    %196 = vmatpush.msra.mxu0 0.0
    %197 = vmatpush.msra.mxu0 0.0
    %198 = vmatpush.msra.mxu0 0.0
    %199 = vmatpush.msra.mxu0 0.0
    %200 = vmatpush.msra.mxu0 0.0
    %201 = vmatpush.msra.mxu0 0.0
    %202 = vmatpush.msra.mxu0 0.0
    %203 = vmatpush.msra.mxu0 0.0
    %204 = vmatpush.msra.mxu0 0.0
    %205 = vmatpush.msra.mxu0 0.0
    %206 = vmatpush.msra.mxu0 %v168
    %207 = vmatpush.msra.mxu0 %v164
    %208 = vmatmul.f32.gmra.mxu0 %v187
    %v209 = vpop.f32.mrf.mxu0
    %v210 = vadd.f32 %v179, %v209
    %211 = vmatmul.f32.gmra.mxu0 %v190
    %v212 = vpop.f32.mrf.mxu0
    %v213 = vadd.f32 %v184, %v212
    %214 = vdwg.mxu0
    %215 = vmatpush.msra.mxu0 0.0
    %216 = vmatpush.msra.mxu0 0.0
    %217 = vmatpush.msra.mxu0 0.0
    %218 = vmatpush.msra.mxu0 0.0
    %219 = vmatpush.msra.mxu0 0.0
    %220 = vmatpush.msra.mxu0 0.0
    %221 = vmatpush.msra.mxu0 0.0
    %222 = vmatpush.msra.mxu0 0.0
    %223 = vmatpush.msra.mxu0 0.0
    %224 = vmatpush.msra.mxu0 0.0
    %225 = vmatpush.msra.mxu0 0.0
    %226 = vmatpush.msra.mxu0 0.0
    %227 = vmatpush.msra.mxu0 0.0
    %228 = vmatpush.msra.mxu0 0.0
    %229 = vmatpush.msra.mxu0 %v169
    %230 = vmatpush.msra.mxu0 %v165
    %231 = vmatmul.f32.gmra.mxu0 %v187
    %v232 = vpop.f32.mrf.mxu0
    %v233 = vadd.f32 %v179, %v232
    %234 = vmatmul.f32.gmra.mxu0 %v190
    %v235 = vpop.f32.mrf.mxu0
    %v236 = vadd.f32 %v184, %v235
    %237 = vdwg.mxu0
    %238 = vmatpush.msra.mxu0 0.0
    %239 = vmatpush.msra.mxu0 0.0
    %240 = vmatpush.msra.mxu0 0.0
    %241 = vmatpush.msra.mxu0 0.0
    %242 = vmatpush.msra.mxu0 0.0
    %243 = vmatpush.msra.mxu0 0.0
    %244 = vmatpush.msra.mxu0 0.0
    %245 = vmatpush.msra.mxu0 0.0
    %246 = vmatpush.msra.mxu0 0.0
    %247 = vmatpush.msra.mxu0 0.0
    %248 = vmatpush.msra.mxu0 0.0
    %249 = vmatpush.msra.mxu0 0.0
    %250 = vmatpush.msra.mxu0 0.0
    %251 = vmatpush.msra.mxu0 0.0
    %252 = vmatpush.msra.mxu0 %v170
    %253 = vmatpush.msra.mxu0 %v166
    %254 = vmatmul.f32.gmra.mxu0 %v187
    %v255 = vpop.f32.mrf.mxu0
    %v256 = vadd.f32 %v179, %v255
    %257 = vmatmul.f32.gmra.mxu0 %v190
    %v258 = vpop.f32.mrf.mxu0
    %v259 = vadd.f32 %v184, %v258
    %260 = vdwg.mxu0
    %261 = vmatpush.msra.mxu0 0.0
    %262 = vmatpush.msra.mxu0 0.0
    %263 = vmatpush.msra.mxu0 0.0
    %264 = vmatpush.msra.mxu0 0.0
    %265 = vmatpush.msra.mxu0 0.0
    %266 = vmatpush.msra.mxu0 0.0
    %267 = vmatpush.msra.mxu0 0.0
    %268 = vmatpush.msra.mxu0 0.0
    %269 = vmatpush.msra.mxu0 0.0
    %270 = vmatpush.msra.mxu0 0.0
    %271 = vmatpush.msra.mxu0 0.0
    %272 = vmatpush.msra.mxu0 0.0
    %273 = vmatpush.msra.mxu0 0.0
    %274 = vmatpush.msra.mxu0 0.0
    %275 = vmatpush.msra.mxu0 %v171
    %276 = vmatpush.msra.mxu0 %v167
    %277 = vmatmul.f32.gmra.mxu0 %v187
    %v278 = vpop.f32.mrf.mxu0
    %v279 = vadd.f32 %v179, %v278
    %280 = vmatmul.f32.gmra.mxu0 %v190
    %v281 = vpop.f32.mrf.mxu0
    %v282 = vadd.f32 %v184, %v281
    %283 = vdwg.mxu0
    %v284 = vmax.f32 %v210, 0.0
    %v285 = vmax.f32 %v233, 0.0
    %v286 = vmax.f32 %v256, 0.0
    %v287 = vmax.f32 %v279, 0.0
    %v288 = vmax.f32 %v213, 0.0
    %v289 = vmax.f32 %v236, 0.0
    %v290 = vmax.f32 %v259, 0.0
    %v291 = vmax.f32 %v282, 0.0
    %v292 = vld [vmem:[%s5] sm:$0xff]
    %v293 = vld [vmem:[%s5 + $0x8] sm:$0x1]
    %v294 = vld [vmem:[%s6] sm:$0xff]
    %v295 = vld [vmem:[%s6 + $0x8] sm:$0x1]
    %297 = vset.pattern.permute.xlu0 0
    %298 = vperm.xlu0 %297, %v294
    %v299 = vpop.permute.xlu0 %298
    %302 = vset.pattern.permute.xlu0 0
    %303 = vperm.xlu0 %302, %v295
    %v304 = vpop.permute.xlu0 %303
    %v307 = vsel %vm65, %v292, 0
    %v310 = vsel %vm65, %v293, 0
    %312 = vmatpush.msra.mxu0 0.0
    %313 = vmatpush.msra.mxu0 0.0
    %314 = vmatpush.msra.mxu0 0.0
    %315 = vmatpush.msra.mxu0 0.0
    %316 = vmatpush.msra.mxu0 0.0
    %317 = vmatpush.msra.mxu0 0.0
    %318 = vmatpush.msra.mxu0 0.0
    %319 = vmatpush.msra.mxu0 0.0
    %320 = vmatpush.msra.mxu0 0.0
    %321 = vmatpush.msra.mxu0 0.0
    %322 = vmatpush.msra.mxu0 0.0
    %323 = vmatpush.msra.mxu0 0.0
    %324 = vmatpush.msra.mxu0 0.0
    %325 = vmatpush.msra.mxu0 0.0
    %326 = vmatpush.msra.mxu0 %v288
    %327 = vmatpush.msra.mxu0 %v284
    %328 = vmatmul.f32.gmra.mxu0 %v307
    %v329 = vpop.f32.mrf.mxu0
    %v330 = vadd.f32 %v299, %v329
    %331 = vmatmul.f32.gmra.mxu0 %v310
    %v332 = vpop.f32.mrf.mxu0
    %v333 = vadd.f32 %v304, %v332
    %334 = vdwg.mxu0
    %335 = vmatpush.msra.mxu0 0.0
    %336 = vmatpush.msra.mxu0 0.0
    %337 = vmatpush.msra.mxu0 0.0
    %338 = vmatpush.msra.mxu0 0.0
    %339 = vmatpush.msra.mxu0 0.0
    %340 = vmatpush.msra.mxu0 0.0
    %341 = vmatpush.msra.mxu0 0.0
    %342 = vmatpush.msra.mxu0 0.0
    %343 = vmatpush.msra.mxu0 0.0
    %344 = vmatpush.msra.mxu0 0.0
    %345 = vmatpush.msra.mxu0 0.0
    %346 = vmatpush.msra.mxu0 0.0
    %347 = vmatpush.msra.mxu0 0.0
    %348 = vmatpush.msra.mxu0 0.0
    %349 = vmatpush.msra.mxu0 %v289
    %350 = vmatpush.msra.mxu0 %v285
    %351 = vmatmul.f32.gmra.mxu0 %v307
    %v352 = vpop.f32.mrf.mxu0
    %v353 = vadd.f32 %v299, %v352
    %354 = vmatmul.f32.gmra.mxu0 %v310
    %v355 = vpop.f32.mrf.mxu0
    %v356 = vadd.f32 %v304, %v355
    %357 = vdwg.mxu0
    %358 = vmatpush.msra.mxu0 0.0
    %359 = vmatpush.msra.mxu0 0.0
    %360 = vmatpush.msra.mxu0 0.0
    %361 = vmatpush.msra.mxu0 0.0
    %362 = vmatpush.msra.mxu0 0.0
    %363 = vmatpush.msra.mxu0 0.0
    %364 = vmatpush.msra.mxu0 0.0
    %365 = vmatpush.msra.mxu0 0.0
    %366 = vmatpush.msra.mxu0 0.0
    %367 = vmatpush.msra.mxu0 0.0
    %368 = vmatpush.msra.mxu0 0.0
    %369 = vmatpush.msra.mxu0 0.0
    %370 = vmatpush.msra.mxu0 0.0
    %371 = vmatpush.msra.mxu0 0.0
    %372 = vmatpush.msra.mxu0 %v290
    %373 = vmatpush.msra.mxu0 %v286
    %374 = vmatmul.f32.gmra.mxu0 %v307
    %v375 = vpop.f32.mrf.mxu0
    %v376 = vadd.f32 %v299, %v375
    %377 = vmatmul.f32.gmra.mxu0 %v310
    %v378 = vpop.f32.mrf.mxu0
    %v379 = vadd.f32 %v304, %v378
    %380 = vdwg.mxu0
    %381 = vmatpush.msra.mxu0 0.0
    %382 = vmatpush.msra.mxu0 0.0
    %383 = vmatpush.msra.mxu0 0.0
    %384 = vmatpush.msra.mxu0 0.0
    %385 = vmatpush.msra.mxu0 0.0
    %386 = vmatpush.msra.mxu0 0.0
    %387 = vmatpush.msra.mxu0 0.0
    %388 = vmatpush.msra.mxu0 0.0
    %389 = vmatpush.msra.mxu0 0.0
    %390 = vmatpush.msra.mxu0 0.0
    %391 = vmatpush.msra.mxu0 0.0
    %392 = vmatpush.msra.mxu0 0.0
    %393 = vmatpush.msra.mxu0 0.0
    %394 = vmatpush.msra.mxu0 0.0
    %395 = vmatpush.msra.mxu0 %v291
    %396 = vmatpush.msra.mxu0 %v287
    %397 = vmatmul.f32.gmra.mxu0 %v307
    %v398 = vpop.f32.mrf.mxu0
    %v399 = vadd.f32 %v299, %v398
    %400 = vmatmul.f32.gmra.mxu0 %v310
    %v401 = vpop.f32.mrf.mxu0
    %v402 = vadd.f32 %v304, %v401
    %403 = vdwg.mxu0
    %v404 = vxor.u32 %v330, 2147483648
    %v405 = vxor.u32 %v353, 2147483648
    %v406 = vxor.u32 %v376, 2147483648
    %v407 = vxor.u32 %v399, 2147483648
    %v408 = vxor.u32 %v333, 2147483648
    %v409 = vxor.u32 %v356, 2147483648
    %v410 = vxor.u32 %v379, 2147483648
    %v411 = vxor.u32 %v402, 2147483648
    %v412 = vmul.f32 %v404, 1.442695
    %v413 = vpow.pop %v412
    %v414 = vmul.f32 %v405, 1.442695
    %v415 = vpow.pop %v414
    %v416 = vmul.f32 %v406, 1.442695
    %v417 = vpow.pop %v416
    %v418 = vmul.f32 %v407, 1.442695
    %v419 = vpow.pop %v418
    %v420 = vmul.f32 %v408, 1.442695
    %v421 = vpow.pop %v420
    %v422 = vmul.f32 %v409, 1.442695
    %v423 = vpow.pop %v422
    %v424 = vmul.f32 %v410, 1.442695
    %v425 = vpow.pop %v424
    %v426 = vmul.f32 %v411, 1.442695
    %v427 = vpow.pop %v426
    %v428 = vadd.f32 %v413, 1.0
    %v429 = vadd.f32 %v415, 1.0
    %v430 = vadd.f32 %v417, 1.0
    %v431 = vadd.f32 %v419, 1.0
    %v432 = vadd.f32 %v421, 1.0
    %v433 = vadd.f32 %v423, 1.0
    %v434 = vadd.f32 %v425, 1.0
    %v435 = vadd.f32 %v427, 1.0
    %v436 = vrcp.pop %v428
    %v437 = vmul.f32 %v428, %v436
    %v438 = vsub.f32 1.0, %v437
    %v439 = vmul.f32 %v436, %v438
    %v440 = vadd.f32 %v436, %v439
    %vm441 = vweird.f32 %v428
    %vm442 = vweird.f32 %v436
    %vm443 = vmor %vm441, %vm442
    %v444 = vsel %vm443, %v436, %v440
    %v445 = vand.u32 2147483647, %v428
    %vm446 = vcmp.eq.f32.partialorder %v445, 8.507059e+37
    %v447 = vand.u32 %v428, 2147483648
    %v448 = vor.u32 1.1754944e-38, %v447
    %v449 = vsel %vm446, %v448, %v444
    %v450 = vmul.f32 1.0, %v449
    %v451 = vrcp.pop %v429
    %v452 = vmul.f32 %v429, %v451
    %v453 = vsub.f32 1.0, %v452
    %v454 = vmul.f32 %v451, %v453
    %v455 = vadd.f32 %v451, %v454
    %vm456 = vweird.f32 %v429
    %vm457 = vweird.f32 %v451
    %vm458 = vmor %vm456, %vm457
    %v459 = vsel %vm458, %v451, %v455
    %v460 = vand.u32 2147483647, %v429
    %vm461 = vcmp.eq.f32.partialorder %v460, 8.507059e+37
    %v462 = vand.u32 %v429, 2147483648
    %v463 = vor.u32 1.1754944e-38, %v462
    %v464 = vsel %vm461, %v463, %v459
    %v465 = vmul.f32 1.0, %v464
    %v466 = vrcp.pop %v430
    %v467 = vmul.f32 %v430, %v466
    %v468 = vsub.f32 1.0, %v467
    %v469 = vmul.f32 %v466, %v468
    %v470 = vadd.f32 %v466, %v469
    %vm471 = vweird.f32 %v430
    %vm472 = vweird.f32 %v466
    %vm473 = vmor %vm471, %vm472
    %v474 = vsel %vm473, %v466, %v470
    %v475 = vand.u32 2147483647, %v430
    %vm476 = vcmp.eq.f32.partialorder %v475, 8.507059e+37
    %v477 = vand.u32 %v430, 2147483648
    %v478 = vor.u32 1.1754944e-38, %v477
    %v479 = vsel %vm476, %v478, %v474
    %v480 = vmul.f32 1.0, %v479
    %v481 = vrcp.pop %v431
    %v482 = vmul.f32 %v431, %v481
    %v483 = vsub.f32 1.0, %v482
    %v484 = vmul.f32 %v481, %v483
    %v485 = vadd.f32 %v481, %v484
    %vm486 = vweird.f32 %v431
    %vm487 = vweird.f32 %v481
    %vm488 = vmor %vm486, %vm487
    %v489 = vsel %vm488, %v481, %v485
    %v490 = vand.u32 2147483647, %v431
    %vm491 = vcmp.eq.f32.partialorder %v490, 8.507059e+37
    %v492 = vand.u32 %v431, 2147483648
    %v493 = vor.u32 1.1754944e-38, %v492
    %v494 = vsel %vm491, %v493, %v489
    %v495 = vmul.f32 1.0, %v494
    %v496 = vrcp.pop %v432
    %v497 = vmul.f32 %v432, %v496
    %v498 = vsub.f32 1.0, %v497
    %v499 = vmul.f32 %v496, %v498
    %v500 = vadd.f32 %v496, %v499
    %vm501 = vweird.f32 %v432
    %vm502 = vweird.f32 %v496
    %vm503 = vmor %vm501, %vm502
    %v504 = vsel %vm503, %v496, %v500
    %v505 = vand.u32 2147483647, %v432
    %vm506 = vcmp.eq.f32.partialorder %v505, 8.507059e+37
    %v507 = vand.u32 %v432, 2147483648
    %v508 = vor.u32 1.1754944e-38, %v507
    %v509 = vsel %vm506, %v508, %v504
    %v510 = vmul.f32 1.0, %v509
    %v511 = vrcp.pop %v433
    %v512 = vmul.f32 %v433, %v511
    %v513 = vsub.f32 1.0, %v512
    %v514 = vmul.f32 %v511, %v513
    %v515 = vadd.f32 %v511, %v514
    %vm516 = vweird.f32 %v433
    %vm517 = vweird.f32 %v511
    %vm518 = vmor %vm516, %vm517
    %v519 = vsel %vm518, %v511, %v515
    %v520 = vand.u32 2147483647, %v433
    %vm521 = vcmp.eq.f32.partialorder %v520, 8.507059e+37
    %v522 = vand.u32 %v433, 2147483648
    %v523 = vor.u32 1.1754944e-38, %v522
    %v524 = vsel %vm521, %v523, %v519
    %v525 = vmul.f32 1.0, %v524
    %v526 = vrcp.pop %v434
    %v527 = vmul.f32 %v434, %v526
    %v528 = vsub.f32 1.0, %v527
    %v529 = vmul.f32 %v526, %v528
    %v530 = vadd.f32 %v526, %v529
    %vm531 = vweird.f32 %v434
    %vm532 = vweird.f32 %v526
    %vm533 = vmor %vm531, %vm532
    %v534 = vsel %vm533, %v526, %v530
    %v535 = vand.u32 2147483647, %v434
    %vm536 = vcmp.eq.f32.partialorder %v535, 8.507059e+37
    %v537 = vand.u32 %v434, 2147483648
    %v538 = vor.u32 1.1754944e-38, %v537
    %v539 = vsel %vm536, %v538, %v534
    %v540 = vmul.f32 1.0, %v539
    %v541 = vrcp.pop %v435
    %v542 = vmul.f32 %v435, %v541
    %v543 = vsub.f32 1.0, %v542
    %v544 = vmul.f32 %v541, %v543
    %v545 = vadd.f32 %v541, %v544
    %vm546 = vweird.f32 %v435
    %vm547 = vweird.f32 %v541
    %vm548 = vmor %vm546, %vm547
    %v549 = vsel %vm548, %v541, %v545
    %v550 = vand.u32 2147483647, %v435
    %vm551 = vcmp.eq.f32.partialorder %v550, 8.507059e+37
    %v552 = vand.u32 %v435, 2147483648
    %v553 = vor.u32 1.1754944e-38, %v552
    %v554 = vsel %vm551, %v553, %v549
    %v555 = vmul.f32 1.0, %v554
    %556 = vst [vmem:[#allocation5] sm:$0xff] %v450
    %557 = vst [vmem:[#allocation5 + $0x8] sm:$0xff] %v465
    %558 = vst [vmem:[#allocation5 + $0x10] sm:$0xff] %v480
    %559 = vst [vmem:[#allocation5 + $0x18] sm:$0xff] %v495
    %560 = vst [vmem:[#allocation5 + $0x20] sm:$0x1] %v510
    %561 = vst [vmem:[#allocation5 + $0x28] sm:$0x1] %v525
    %562 = vst [vmem:[#allocation5 + $0x30] sm:$0x1] %v540
    %563 = vst [vmem:[#allocation5 + $0x38] sm:$0x1] %v555
    // Predicated region
    $region34: #{tpu_custom_call.1} parent=1 // pred_check
      _
    $region35: #{tpu_custom_call.1} parent=1 // pred_check_branch
      %565 = sbr.rel (0) target = $region37
    $region36: #{tpu_custom_call.1} parent=1 // pred_region
      %567 = vsyncadd [#allocation4], 0
      %s568 = sshll.u32 [#allocation5], 4
      %s569 = int_to_ptr.vmem [resolvable:$true] %s568
      %s570 = sshll.u32 %s7, 4
      %s571 = int_to_ptr.hbm [resolvable:$true] %s570
      %576 = dma.vmem_to_hbm [thread:$0]  %s569, 1024, %s571, [#allocation4], 512, 512, 32
    $region37: #{tpu_custom_call.1} parent=1 // pred_fallthru
      _
    // Predicated region
    $region38: #{tpu_custom_call.1} parent=1 // pred_check
      _
    $region39: #{tpu_custom_call.1} parent=1 // pred_check_branch
      %578 = sbr.rel (0) target = $region41
    $region40: #{tpu_custom_call.1} parent=1 // pred_region
      %580 = dma.done [#allocation4], 1024
    $region41: #{tpu_custom_call.1} parent=1 // pred_fallthru
      _
    %581 = vsyncpa [#allocation3], 1
    %582 = vsyncpa [#allocation4], 1

</llo_original>
